<compile_context>
chip_gen: v6e
topology: v6e:2x2x1
jax: 0.10.0
libtpu: 0.0.40
codegen_flags: <defaults>
</compile_context>

<pallas_src>
import functools

import jax
import jax.numpy as jnp
from jax import lax
from jax.experimental import pallas as pl
from jax.experimental.pallas import tpu as pltpu


def _rbf_kernel(x_ref, o_ref, *, c0: float, dc: float, sqrt_gamma: float,
                bins: int):
    # x_ref: (tile, 1) column of distances; o_ref: (tile, bins).
    xs = x_ref[...] * sqrt_gamma                                    # (tile, 1)
    # centers (pre-scaled by sqrt(gamma)) generated in-register:
    #   cs[b] = sqrt(gamma) * (vmin + b * step) = c0 + b * dc
    b = lax.broadcasted_iota(jnp.int32, (1, bins), 1).astype(jnp.float32)
    cs = c0 + dc * b                                                # (1, bins)
    d = xs - cs                                                     # (tile, bins)
    # exp(-(d*d)) == exp(-gamma * (x - c)**2); cast only at the store so the
    # math stays f32 on all generations (v5e has no bf16 VPU/EUP).
    o_ref[...] = jnp.exp(-(d * d)).astype(o_ref.dtype)


def _round_up(x: int, m: int) -> int:
    return ((x + m - 1) // m) * m


def rbf_expansion(x, *, vmin: float = 0.0, vmax: float = 8.0, bins: int = 40,
                  lengthscale=None, tile_n: int = 2048,
                  out_dtype=jnp.float32):
    """x: (N,) -> (N, bins), exp(-gamma * (x[:, None] - centers)**2)."""
    x = jnp.asarray(x, jnp.float32)
    (n,) = x.shape

    if lengthscale is None:
        if bins < 2:
            raise ValueError("bins must be >= 2 when lengthscale is None")
        step = (vmax - vmin) / (bins - 1)    # mean(diff(linspace)) exactly
        gamma = 1.0 / step
    else:
        step = (vmax - vmin) / (bins - 1) if bins > 1 else 0.0
        gamma = 1.0 / (float(lengthscale) ** 2)

    sg = float(gamma) ** 0.5
    c0 = sg * float(vmin)
    dc = sg * float(step)

    # Big row tiles (>=2048 when N allows) for pipelining efficiency; clamp to
    # N (rounded to the 8-sublane granule) so small inputs use a single block.
    tile = min(int(tile_n), _round_up(max(n, 1), 8))
    tile = _round_up(tile, 8)
    grid = (pl.cdiv(n, tile),)

    kernel = functools.partial(_rbf_kernel, c0=c0, dc=dc, sqrt_gamma=sg,
                               bins=bins)

    out = pl.pallas_call(
        kernel,
        out_shape=jax.ShapeDtypeStruct((n, bins), out_dtype),
        grid_spec=pltpu.PrefetchScalarGridSpec(
            num_scalar_prefetch=0,
            grid=grid,
            in_specs=[pl.BlockSpec((tile, 1), lambda i: (i, 0))],
            out_specs=pl.BlockSpec((tile, bins), lambda i: (i, 0)),
        ),
        # Single independent grid axis: shards across the 2 TensorCores on v7x
        # whenever the grid has >= 2 steps.
        compiler_params=pltpu.CompilerParams(
            dimension_semantics=("parallel",)),
    )(x.reshape(n, 1))
    return out


def rbf_expansion_ref(x, *, vmin=0.0, vmax=8.0, bins=40, lengthscale=None):
    centers = jnp.linspace(vmin, vmax, bins, dtype=jnp.float32)
    if lengthscale is None:
        gamma = (bins - 1) / (vmax - vmin)
    else:
        gamma = 1.0 / (float(lengthscale) ** 2)
    return jnp.exp(-gamma * (x[:, None] - centers[None, :]) ** 2)


if __name__ == "__main__":
    key = jax.random.PRNGKey(0)
    k1, k2 = jax.random.split(key)

    # Case 1: small N that is not a multiple of 8 -> single (grid=(1,)) block,
    # edge rows clipped by Pallas.
    n1 = 300
    x1 = jax.random.uniform(k1, (n1,), jnp.float32, 0.0, 8.0)
    out1 = jax.block_until_ready(rbf_expansion(x1))
    ref1 = rbf_expansion_ref(x1)
    assert out1.shape == (n1, 40)
    assert out1.dtype == jnp.float32
    assert jnp.allclose(out1, ref1, atol=1e-5, rtol=1e-4)

    # Case 2: multi-step grid with a partial tail tile (1000 = 3*256 + 232),
    # plus the explicit-lengthscale branch (gamma = 1/ls**2).
    n2 = 1000
    x2 = jax.random.uniform(k2, (n2,), jnp.float32, 0.0, 8.0)
    out2 = jax.block_until_ready(rbf_expansion(x2, tile_n=256,
                                               lengthscale=0.5))
    ref2 = rbf_expansion_ref(x2, lengthscale=0.5)
    assert out2.shape == (n2, 40)
    assert jnp.allclose(out2, ref2, atol=1e-5, rtol=1e-4)

    print("KERNEL_OK")
</pallas_src>

<mosaic_0001>
module attributes {stable_mosaic.version = 11 : i64} {
  func.func @_rbf_kernel(%arg0: i32, %arg1: memref<304x1xf32, #tpu.memory_space<vmem>>, %arg2: memref<304x40xf32, #tpu.memory_space<vmem>>) attributes {dimension_semantics = [#tpu.dimension_semantics<parallel>], iteration_bounds = array<i64: 1>, scalar_prefetch = 0 : i64, scratch_operands = 0 : i64, tpu.core_type = #tpu.core_type<tc>, window_params = [{transform_indices = @transform_0, window_bounds = array<i64: 304, 1>}, {transform_indices = @transform_1, window_bounds = array<i64: 304, 40>}]} {
    %c0 = arith.constant 0 : index
    %c0_0 = arith.constant 0 : index
    %0 = vector.load %arg1[%c0, %c0_0] : memref<304x1xf32, #tpu.memory_space<vmem>>, vector<304x1xf32>
    %cst = arith.constant 2.207940e+00 : f32
    %1 = vector.broadcast %cst : f32 to vector<304x1xf32>
    %2 = arith.mulf %0, %1 : vector<304x1xf32>
    %3 = tpu.iota {dimensions = array<i32: 1>} : vector<1x40xi32>
    %4 = arith.sitofp %3 : vector<1x40xi32> to vector<1x40xf32>
    %cst_1 = arith.constant 0.452910811 : f32
    %5 = vector.broadcast %cst_1 : f32 to vector<1x40xf32>
    %6 = arith.mulf %5, %4 : vector<1x40xf32>
    %cst_2 = arith.constant 0.000000e+00 : f32
    %7 = vector.broadcast %cst_2 : f32 to vector<1x40xf32>
    %8 = arith.addf %7, %6 : vector<1x40xf32>
    %9 = vector.broadcast %2 : vector<304x1xf32> to vector<304x40xf32>
    %10 = vector.broadcast %8 : vector<1x40xf32> to vector<304x40xf32>
    %11 = arith.subf %9, %10 : vector<304x40xf32>
    %12 = arith.mulf %11, %11 : vector<304x40xf32>
    %cst_3 = arith.constant 0.000000e+00 : f32
    %13 = vector.broadcast %cst_3 : f32 to vector<304x40xf32>
    %14 = arith.subf %13, %12 : vector<304x40xf32>
    %15 = math.exp %14 : vector<304x40xf32>
    %c0_4 = arith.constant 0 : index
    %c0_5 = arith.constant 0 : index
    %16 = vector.load %arg2[%c0_4, %c0_5] : memref<304x40xf32, #tpu.memory_space<vmem>>, vector<304x40xf32>
    tpu.vector_store %arg2[%c0_4, %c0_5], %15 {strides = array<i32>} : memref<304x40xf32, #tpu.memory_space<vmem>>, vector<304x40xf32>,
    return
  }
  func.func @transform_0(%arg0: i32) -> (i32, i32) {
    %c0_i32 = arith.constant 0 : i32
    %c0_i32_0 = arith.constant 0 : i32
    return %arg0, %c0_i32 : i32, i32
  }
  func.func @transform_1(%arg0: i32) -> (i32, i32) {
    %c0_i32 = arith.constant 0 : i32
    %c0_i32_0 = arith.constant 0 : i32
    return %arg0, %c0_i32 : i32, i32
  }
}

</mosaic_0001>

<llo_original>
// kernel: tpu_custom_call.1
$region0: #{tpu_custom_call.1}
  #allocation0 [shape = 'u32[]', space=smem, size = 0x4, offset = 0x4, fixed_abs, tag = 'smem constant byte address 0x4 - core index']
  #allocation1 [shape = 'u32[144,128]{1,0:T(1,128)}', space=vmem, size = 0x12000, scoped, tag = 'internal scratch']
  %s0 = inlined_call_operand.vmem [shape: f32[300,1], index: 0, kind: input, shape index: {}]
  %s1 = inlined_call_operand.vmem [shape: f32[300,40], index: 1, kind: output, shape index: {}]
  %s2 = sld [smem:[#allocation0]]
  $region14: #{tpu_custom_call.1} parent=0
    _
  %s4 = ssub.s32 1, %s2
  %s5 = scalar_select 0, %s4, %s2
  // Predicated region
  $region2: #{tpu_custom_call.1} parent=0 // pred_check
    _
  $region3: #{tpu_custom_call.1} parent=0 // pred_check_branch
    %7 = sbr.rel (0) target = $region5
  $region4: #{tpu_custom_call.1} parent=0 // pred_region
    _
  $region5: #{tpu_custom_call.1} parent=0 // pred_fallthru
    _
  %v8 = vld [vmem:[%s0] sm:$0xff]
  %v9 = vld [vmem:[%s0 + $0x8] sm:$0xff]
  %v10 = vld [vmem:[%s0 + $0x10] sm:$0xff]
  %v11 = vld [vmem:[%s0 + $0x18] sm:$0xff]
  %v12 = vld [vmem:[%s0 + $0x20] sm:$0xff]
  %v13 = vld [vmem:[%s0 + $0x28] sm:$0xff]
  %v14 = vld [vmem:[%s0 + $0x30] sm:$0xff]
  %v15 = vld [vmem:[%s0 + $0x38] sm:$0xff]
  %v16 = vld [vmem:[%s0 + $0x40] sm:$0xff]
  %v17 = vld [vmem:[%s0 + $0x48] sm:$0xff]
  %v18 = vld [vmem:[%s0 + $0x50] sm:$0xff]
  %v19 = vld [vmem:[%s0 + $0x58] sm:$0xff]
  %v20 = vld [vmem:[%s0 + $0x60] sm:$0xff]
  %v21 = vld [vmem:[%s0 + $0x68] sm:$0xff]
  %v22 = vld [vmem:[%s0 + $0x70] sm:$0xff]
  %v23 = vld [vmem:[%s0 + $0x78] sm:$0xff]
  %v24 = vld [vmem:[%s0 + $0x80] sm:$0xff]
  %v25 = vld [vmem:[%s0 + $0x88] sm:$0xff]
  %v26 = vld [vmem:[%s0 + $0x90] sm:$0xff]
  %v27 = vld [vmem:[%s0 + $0x98] sm:$0xff]
  %v28 = vld [vmem:[%s0 + $0xa0] sm:$0xff]
  %v29 = vld [vmem:[%s0 + $0xa8] sm:$0xff]
  %v30 = vld [vmem:[%s0 + $0xb0] sm:$0xff]
  %v31 = vld [vmem:[%s0 + $0xb8] sm:$0xff]
  %v32 = vld [vmem:[%s0 + $0xc0] sm:$0xff]
  %v33 = vld [vmem:[%s0 + $0xc8] sm:$0xff]
  %v34 = vld [vmem:[%s0 + $0xd0] sm:$0xff]
  %v35 = vld [vmem:[%s0 + $0xd8] sm:$0xff]
  %v36 = vld [vmem:[%s0 + $0xe0] sm:$0xff]
  %v37 = vld [vmem:[%s0 + $0xe8] sm:$0xff]
  %v38 = vld [vmem:[%s0 + $0xf0] sm:$0xff]
  %v39 = vld [vmem:[%s0 + $0xf8] sm:$0xff]
  %v40 = vld [vmem:[%s0 + $0x100] sm:$0xff]
  %v41 = vld [vmem:[%s0 + $0x108] sm:$0xff]
  %v42 = vld [vmem:[%s0 + $0x110] sm:$0xff]
  %v43 = vld [vmem:[%s0 + $0x118] sm:$0xff]
  %v44 = vld [vmem:[%s0 + $0x120] sm:$0xff]
  %v45 = vld [vmem:[%s0 + $0x128] sm:$0xff]
  %v46 = vmul.f32 %v8, 2.20794
  %v47 = vmul.f32 %v9, 2.20794
  %v48 = vmul.f32 %v10, 2.20794
  %v49 = vmul.f32 %v11, 2.20794
  %v50 = vmul.f32 %v12, 2.20794
  %v51 = vmul.f32 %v13, 2.20794
  %v52 = vmul.f32 %v14, 2.20794
  %v53 = vmul.f32 %v15, 2.20794
  %v54 = vmul.f32 %v16, 2.20794
  %v55 = vmul.f32 %v17, 2.20794
  %v56 = vmul.f32 %v18, 2.20794
  %v57 = vmul.f32 %v19, 2.20794
  %v58 = vmul.f32 %v20, 2.20794
  %v59 = vmul.f32 %v21, 2.20794
  %v60 = vmul.f32 %v22, 2.20794
  %v61 = vmul.f32 %v23, 2.20794
  %v62 = vmul.f32 %v24, 2.20794
  %v63 = vmul.f32 %v25, 2.20794
  %v64 = vmul.f32 %v26, 2.20794
  %v65 = vmul.f32 %v27, 2.20794
  %v66 = vmul.f32 %v28, 2.20794
  %v67 = vmul.f32 %v29, 2.20794
  %v68 = vmul.f32 %v30, 2.20794
  %v69 = vmul.f32 %v31, 2.20794
  %v70 = vmul.f32 %v32, 2.20794
  %v71 = vmul.f32 %v33, 2.20794
  %v72 = vmul.f32 %v34, 2.20794
  %v73 = vmul.f32 %v35, 2.20794
  %v74 = vmul.f32 %v36, 2.20794
  %v75 = vmul.f32 %v37, 2.20794
  %v76 = vmul.f32 %v38, 2.20794
  %v77 = vmul.f32 %v39, 2.20794
  %v78 = vmul.f32 %v40, 2.20794
  %v79 = vmul.f32 %v41, 2.20794
  %v80 = vmul.f32 %v42, 2.20794
  %v81 = vmul.f32 %v43, 2.20794
  %v82 = vmul.f32 %v44, 2.20794
  %v83 = vmul.f32 %v45, 2.20794
  %v84 = vlaneseq
  %v85 = vand.u32 %v84, 127
  %v86 = vcvt.s32.f32 %v85
  %v87 = vmul.f32 %v86, 0.4529108
  %v88 = vadd.f32 %v87, 0.0
  %90 = vset.pattern.permute.xlu0 0
  %91 = vperm.xlu0 %90, %v46
  %v92 = vpop.permute.xlu0 %91
  %95 = vset.pattern.permute.xlu0 0
  %96 = vperm.xlu0 %95, %v47
  %v97 = vpop.permute.xlu0 %96
  %100 = vset.pattern.permute.xlu0 0
  %101 = vperm.xlu0 %100, %v48
  %v102 = vpop.permute.xlu0 %101
  %105 = vset.pattern.permute.xlu0 0
  %106 = vperm.xlu0 %105, %v49
  %v107 = vpop.permute.xlu0 %106
  %110 = vset.pattern.permute.xlu0 0
  %111 = vperm.xlu0 %110, %v50
  %v112 = vpop.permute.xlu0 %111
  %115 = vset.pattern.permute.xlu0 0
  %116 = vperm.xlu0 %115, %v51
  %v117 = vpop.permute.xlu0 %116
  %120 = vset.pattern.permute.xlu0 0
  %121 = vperm.xlu0 %120, %v52
  %v122 = vpop.permute.xlu0 %121
  %125 = vset.pattern.permute.xlu0 0
  %126 = vperm.xlu0 %125, %v53
  %v127 = vpop.permute.xlu0 %126
  %130 = vset.pattern.permute.xlu0 0
  %131 = vperm.xlu0 %130, %v54
  %v132 = vpop.permute.xlu0 %131
  %135 = vset.pattern.permute.xlu0 0
  %136 = vperm.xlu0 %135, %v55
  %v137 = vpop.permute.xlu0 %136
  %140 = vset.pattern.permute.xlu0 0
  %141 = vperm.xlu0 %140, %v56
  %v142 = vpop.permute.xlu0 %141
  %145 = vset.pattern.permute.xlu0 0
  %146 = vperm.xlu0 %145, %v57
  %v147 = vpop.permute.xlu0 %146
  %150 = vset.pattern.permute.xlu0 0
  %151 = vperm.xlu0 %150, %v58
  %v152 = vpop.permute.xlu0 %151
  %155 = vset.pattern.permute.xlu0 0
  %156 = vperm.xlu0 %155, %v59
  %v157 = vpop.permute.xlu0 %156
  %160 = vset.pattern.permute.xlu0 0
  %161 = vperm.xlu0 %160, %v60
  %v162 = vpop.permute.xlu0 %161
  %165 = vset.pattern.permute.xlu0 0
  %166 = vperm.xlu0 %165, %v61
  %v167 = vpop.permute.xlu0 %166
  %170 = vset.pattern.permute.xlu0 0
  %171 = vperm.xlu0 %170, %v62
  %v172 = vpop.permute.xlu0 %171
  %175 = vset.pattern.permute.xlu0 0
  %176 = vperm.xlu0 %175, %v63
  %v177 = vpop.permute.xlu0 %176
  %180 = vset.pattern.permute.xlu0 0
  %181 = vperm.xlu0 %180, %v64
  %v182 = vpop.permute.xlu0 %181
  %185 = vset.pattern.permute.xlu0 0
  %186 = vperm.xlu0 %185, %v65
  %v187 = vpop.permute.xlu0 %186
  %190 = vset.pattern.permute.xlu0 0
  %191 = vperm.xlu0 %190, %v66
  %v192 = vpop.permute.xlu0 %191
  %195 = vset.pattern.permute.xlu0 0
  %196 = vperm.xlu0 %195, %v67
  %v197 = vpop.permute.xlu0 %196
  %200 = vset.pattern.permute.xlu0 0
  %201 = vperm.xlu0 %200, %v68
  %v202 = vpop.permute.xlu0 %201
  %205 = vset.pattern.permute.xlu0 0
  %206 = vperm.xlu0 %205, %v69
  %v207 = vpop.permute.xlu0 %206
  %210 = vset.pattern.permute.xlu0 0
  %211 = vperm.xlu0 %210, %v70
  %v212 = vpop.permute.xlu0 %211
  %215 = vset.pattern.permute.xlu0 0
  %216 = vperm.xlu0 %215, %v71
  %v217 = vpop.permute.xlu0 %216
  %220 = vset.pattern.permute.xlu0 0
  %221 = vperm.xlu0 %220, %v72
  %v222 = vpop.permute.xlu0 %221
  %225 = vset.pattern.permute.xlu0 0
  %226 = vperm.xlu0 %225, %v73
  %v227 = vpop.permute.xlu0 %226
  %230 = vset.pattern.permute.xlu0 0
  %231 = vperm.xlu0 %230, %v74
  %v232 = vpop.permute.xlu0 %231
  %235 = vset.pattern.permute.xlu0 0
  %236 = vperm.xlu0 %235, %v75
  %v237 = vpop.permute.xlu0 %236
  %240 = vset.pattern.permute.xlu0 0
  %241 = vperm.xlu0 %240, %v76
  %v242 = vpop.permute.xlu0 %241
  %245 = vset.pattern.permute.xlu0 0
  %246 = vperm.xlu0 %245, %v77
  %v247 = vpop.permute.xlu0 %246
  %250 = vset.pattern.permute.xlu0 0
  %251 = vperm.xlu0 %250, %v78
  %v252 = vpop.permute.xlu0 %251
  %255 = vset.pattern.permute.xlu0 0
  %256 = vperm.xlu0 %255, %v79
  %v257 = vpop.permute.xlu0 %256
  %260 = vset.pattern.permute.xlu0 0
  %261 = vperm.xlu0 %260, %v80
  %v262 = vpop.permute.xlu0 %261
  %265 = vset.pattern.permute.xlu0 0
  %266 = vperm.xlu0 %265, %v81
  %v267 = vpop.permute.xlu0 %266
  %270 = vset.pattern.permute.xlu0 0
  %271 = vperm.xlu0 %270, %v82
  %v272 = vpop.permute.xlu0 %271
  %275 = vset.pattern.permute.xlu0 0
  %276 = vperm.xlu0 %275, %v83
  %v277 = vpop.permute.xlu0 %276
  %v279 = vsub.f32 %v92, %v88
  %v280 = vsub.f32 %v97, %v88
  %v281 = vsub.f32 %v102, %v88
  %v282 = vsub.f32 %v107, %v88
  %v283 = vsub.f32 %v112, %v88
  %v284 = vsub.f32 %v117, %v88
  %v285 = vsub.f32 %v122, %v88
  %v286 = vsub.f32 %v127, %v88
  %v287 = vsub.f32 %v132, %v88
  %v288 = vsub.f32 %v137, %v88
  %v289 = vsub.f32 %v142, %v88
  %v290 = vsub.f32 %v147, %v88
  %v291 = vsub.f32 %v152, %v88
  %v292 = vsub.f32 %v157, %v88
  %v293 = vsub.f32 %v162, %v88
  %v294 = vsub.f32 %v167, %v88
  %v295 = vsub.f32 %v172, %v88
  %v296 = vsub.f32 %v177, %v88
  %v297 = vsub.f32 %v182, %v88
  %v298 = vsub.f32 %v187, %v88
  %v299 = vsub.f32 %v192, %v88
  %v300 = vsub.f32 %v197, %v88
  %v301 = vsub.f32 %v202, %v88
  %v302 = vsub.f32 %v207, %v88
  %v303 = vsub.f32 %v212, %v88
  %v304 = vsub.f32 %v217, %v88
  %v305 = vsub.f32 %v222, %v88
  %v306 = vsub.f32 %v227, %v88
  %v307 = vsub.f32 %v232, %v88
  %v308 = vsub.f32 %v237, %v88
  %v309 = vsub.f32 %v242, %v88
  %v310 = vsub.f32 %v247, %v88
  %v311 = vsub.f32 %v252, %v88
  %v312 = vsub.f32 %v257, %v88
  %v313 = vsub.f32 %v262, %v88
  %v314 = vsub.f32 %v267, %v88
  %v315 = vsub.f32 %v272, %v88
  %v316 = vsub.f32 %v277, %v88
  %v317 = vmul.f32 %v279, %v279
  %v318 = vmul.f32 %v280, %v280
  %v319 = vmul.f32 %v281, %v281
  %v320 = vmul.f32 %v282, %v282
  %v321 = vmul.f32 %v283, %v283
  %v322 = vmul.f32 %v284, %v284
  %v323 = vmul.f32 %v285, %v285
  %v324 = vmul.f32 %v286, %v286
  %v325 = vmul.f32 %v287, %v287
  %v326 = vmul.f32 %v288, %v288
  %v327 = vmul.f32 %v289, %v289
  %v328 = vmul.f32 %v290, %v290
  %v329 = vmul.f32 %v291, %v291
  %v330 = vmul.f32 %v292, %v292
  %v331 = vmul.f32 %v293, %v293
  %v332 = vmul.f32 %v294, %v294
  %v333 = vmul.f32 %v295, %v295
  %v334 = vmul.f32 %v296, %v296
  %v335 = vmul.f32 %v297, %v297
  %v336 = vmul.f32 %v298, %v298
  %v337 = vmul.f32 %v299, %v299
  %v338 = vmul.f32 %v300, %v300
  %v339 = vmul.f32 %v301, %v301
  %v340 = vmul.f32 %v302, %v302
  %v341 = vmul.f32 %v303, %v303
  %v342 = vmul.f32 %v304, %v304
  %v343 = vmul.f32 %v305, %v305
  %v344 = vmul.f32 %v306, %v306
  %v345 = vmul.f32 %v307, %v307
  %v346 = vmul.f32 %v308, %v308
  %v347 = vmul.f32 %v309, %v309
  %v348 = vmul.f32 %v310, %v310
  %v349 = vmul.f32 %v311, %v311
  %v350 = vmul.f32 %v312, %v312
  %v351 = vmul.f32 %v313, %v313
  %v352 = vmul.f32 %v314, %v314
  %v353 = vmul.f32 %v315, %v315
  %v354 = vmul.f32 %v316, %v316
  %v355 = vsub.f32 0.0, %v317
  %v356 = vsub.f32 0.0, %v318
  %v357 = vsub.f32 0.0, %v319
  %v358 = vsub.f32 0.0, %v320
  %v359 = vsub.f32 0.0, %v321
  %v360 = vsub.f32 0.0, %v322
  %v361 = vsub.f32 0.0, %v323
  %v362 = vsub.f32 0.0, %v324
  %v363 = vsub.f32 0.0, %v325
  %v364 = vsub.f32 0.0, %v326
  %v365 = vsub.f32 0.0, %v327
  %v366 = vsub.f32 0.0, %v328
  %v367 = vsub.f32 0.0, %v329
  %v368 = vsub.f32 0.0, %v330
  %v369 = vsub.f32 0.0, %v331
  %v370 = vsub.f32 0.0, %v332
  %v371 = vsub.f32 0.0, %v333
  %v372 = vsub.f32 0.0, %v334
  %v373 = vsub.f32 0.0, %v335
  %v374 = vsub.f32 0.0, %v336
  %v375 = vsub.f32 0.0, %v337
  %v376 = vsub.f32 0.0, %v338
  %v377 = vsub.f32 0.0, %v339
  %v378 = vsub.f32 0.0, %v340
  %v379 = vsub.f32 0.0, %v341
  %v380 = vsub.f32 0.0, %v342
  %v381 = vsub.f32 0.0, %v343
  %v382 = vsub.f32 0.0, %v344
  %v383 = vsub.f32 0.0, %v345
  %v384 = vsub.f32 0.0, %v346
  %v385 = vsub.f32 0.0, %v347
  %v386 = vsub.f32 0.0, %v348
  %v387 = vsub.f32 0.0, %v349
  %v388 = vsub.f32 0.0, %v350
  %v389 = vsub.f32 0.0, %v351
  %v390 = vsub.f32 0.0, %v352
  %v391 = vsub.f32 0.0, %v353
  %v392 = vsub.f32 0.0, %v354
  %v393 = vmul.f32 %v355, 1.442695
  %v394 = vpow.pop %v393
  %v395 = vmul.f32 %v356, 1.442695
  %v396 = vpow.pop %v395
  %v397 = vmul.f32 %v357, 1.442695
  %v398 = vpow.pop %v397
  %v399 = vmul.f32 %v358, 1.442695
  %v400 = vpow.pop %v399
  %v401 = vmul.f32 %v359, 1.442695
  %v402 = vpow.pop %v401
  %v403 = vmul.f32 %v360, 1.442695
  %v404 = vpow.pop %v403
  %v405 = vmul.f32 %v361, 1.442695
  %v406 = vpow.pop %v405
  %v407 = vmul.f32 %v362, 1.442695
  %v408 = vpow.pop %v407
  %v409 = vmul.f32 %v363, 1.442695
  %v410 = vpow.pop %v409
  %v411 = vmul.f32 %v364, 1.442695
  %v412 = vpow.pop %v411
  %v413 = vmul.f32 %v365, 1.442695
  %v414 = vpow.pop %v413
  %v415 = vmul.f32 %v366, 1.442695
  %v416 = vpow.pop %v415
  %v417 = vmul.f32 %v367, 1.442695
  %v418 = vpow.pop %v417
  %v419 = vmul.f32 %v368, 1.442695
  %v420 = vpow.pop %v419
  %v421 = vmul.f32 %v369, 1.442695
  %v422 = vpow.pop %v421
  %v423 = vmul.f32 %v370, 1.442695
  %v424 = vpow.pop %v423
  %v425 = vmul.f32 %v371, 1.442695
  %v426 = vpow.pop %v425
  %v427 = vmul.f32 %v372, 1.442695
  %v428 = vpow.pop %v427
  %v429 = vmul.f32 %v373, 1.442695
  %v430 = vpow.pop %v429
  %v431 = vmul.f32 %v374, 1.442695
  %v432 = vpow.pop %v431
  %v433 = vmul.f32 %v375, 1.442695
  %v434 = vpow.pop %v433
  %v435 = vmul.f32 %v376, 1.442695
  %v436 = vpow.pop %v435
  %v437 = vmul.f32 %v377, 1.442695
  %v438 = vpow.pop %v437
  %v439 = vmul.f32 %v378, 1.442695
  %v440 = vpow.pop %v439
  %v441 = vmul.f32 %v379, 1.442695
  %v442 = vpow.pop %v441
  %v443 = vmul.f32 %v380, 1.442695
  %v444 = vpow.pop %v443
  %v445 = vmul.f32 %v381, 1.442695
  %v446 = vpow.pop %v445
  %v447 = vmul.f32 %v382, 1.442695
  %v448 = vpow.pop %v447
  %v449 = vmul.f32 %v383, 1.442695
  %v450 = vpow.pop %v449
  %v451 = vmul.f32 %v384, 1.442695
  %v452 = vpow.pop %v451
  %v453 = vmul.f32 %v385, 1.442695
  %v454 = vpow.pop %v453
  %v455 = vmul.f32 %v386, 1.442695
  %v456 = vpow.pop %v455
  %v457 = vmul.f32 %v387, 1.442695
  %v458 = vpow.pop %v457
  %v459 = vmul.f32 %v388, 1.442695
  %v460 = vpow.pop %v459
  %v461 = vmul.f32 %v389, 1.442695
  %v462 = vpow.pop %v461
  %v463 = vmul.f32 %v390, 1.442695
  %v464 = vpow.pop %v463
  %v465 = vmul.f32 %v391, 1.442695
  %v466 = vpow.pop %v465
  %v467 = vmul.f32 %v392, 1.442695
  %v468 = vpow.pop %v467
  %vm469 = vcmask 326656
  %470 = vst.msk [vmem:[%s1] sm:$0xff] %vm469, %v394
  %471 = vst.msk [vmem:[%s1 + $0x8] sm:$0xff] %vm469, %v396
  %472 = vst.msk [vmem:[%s1 + $0x10] sm:$0xff] %vm469, %v398
  %473 = vst.msk [vmem:[%s1 + $0x18] sm:$0xff] %vm469, %v400
  %474 = vst.msk [vmem:[%s1 + $0x20] sm:$0xff] %vm469, %v402
  %475 = vst.msk [vmem:[%s1 + $0x28] sm:$0xff] %vm469, %v404
  %476 = vst.msk [vmem:[%s1 + $0x30] sm:$0xff] %vm469, %v406
  %477 = vst.msk [vmem:[%s1 + $0x38] sm:$0xff] %vm469, %v408
  %478 = vst.msk [vmem:[%s1 + $0x40] sm:$0xff] %vm469, %v410
  %479 = vst.msk [vmem:[%s1 + $0x48] sm:$0xff] %vm469, %v412
  %480 = vst.msk [vmem:[%s1 + $0x50] sm:$0xff] %vm469, %v414
  %481 = vst.msk [vmem:[%s1 + $0x58] sm:$0xff] %vm469, %v416
  %482 = vst.msk [vmem:[%s1 + $0x60] sm:$0xff] %vm469, %v418
  %483 = vst.msk [vmem:[%s1 + $0x68] sm:$0xff] %vm469, %v420
  %484 = vst.msk [vmem:[%s1 + $0x70] sm:$0xff] %vm469, %v422
  %485 = vst.msk [vmem:[%s1 + $0x78] sm:$0xff] %vm469, %v424
  %486 = vst.msk [vmem:[%s1 + $0x80] sm:$0xff] %vm469, %v426
  %487 = vst.msk [vmem:[%s1 + $0x88] sm:$0xff] %vm469, %v428
  %488 = vst.msk [vmem:[%s1 + $0x90] sm:$0xff] %vm469, %v430
  %489 = vst.msk [vmem:[%s1 + $0x98] sm:$0xff] %vm469, %v432
  %490 = vst.msk [vmem:[%s1 + $0xa0] sm:$0xff] %vm469, %v434
  %491 = vst.msk [vmem:[%s1 + $0xa8] sm:$0xff] %vm469, %v436
  %492 = vst.msk [vmem:[%s1 + $0xb0] sm:$0xff] %vm469, %v438
  %493 = vst.msk [vmem:[%s1 + $0xb8] sm:$0xff] %vm469, %v440
  %494 = vst.msk [vmem:[%s1 + $0xc0] sm:$0xff] %vm469, %v442
  %495 = vst.msk [vmem:[%s1 + $0xc8] sm:$0xff] %vm469, %v444
  %496 = vst.msk [vmem:[%s1 + $0xd0] sm:$0xff] %vm469, %v446
  %497 = vst.msk [vmem:[%s1 + $0xd8] sm:$0xff] %vm469, %v448
  %498 = vst.msk [vmem:[%s1 + $0xe0] sm:$0xff] %vm469, %v450
  %499 = vst.msk [vmem:[%s1 + $0xe8] sm:$0xff] %vm469, %v452
  %500 = vst.msk [vmem:[%s1 + $0xf0] sm:$0xff] %vm469, %v454
  %501 = vst.msk [vmem:[%s1 + $0xf8] sm:$0xff] %vm469, %v456
  %502 = vst.msk [vmem:[%s1 + $0x100] sm:$0xff] %vm469, %v458
  %503 = vst.msk [vmem:[%s1 + $0x108] sm:$0xff] %vm469, %v460
  %504 = vst.msk [vmem:[%s1 + $0x110] sm:$0xff] %vm469, %v462
  %505 = vst.msk [vmem:[%s1 + $0x118] sm:$0xff] %vm469, %v464
  %506 = vst.msk [vmem:[%s1 + $0x120] sm:$0xff] %vm469, %v466
  %507 = vst.msk [vmem:[%s1 + $0x128] sm:$0xff] %vm469, %v468
  // Predicated region
  $region6: #{tpu_custom_call.1} parent=0 // pred_check
    _
  $region7: #{tpu_custom_call.1} parent=0 // pred_check_branch
    %509 = sbr.rel (0) target = $region9
  $region8: #{tpu_custom_call.1} parent=0 // pred_region
    _
  $region9: #{tpu_custom_call.1} parent=0 // pred_fallthru
    _
  // Predicated region
  $region10: #{tpu_custom_call.1} parent=0 // pred_check
    _
  $region11: #{tpu_custom_call.1} parent=0 // pred_check_branch
    %511 = sbr.rel (0) target = $region13
  $region12: #{tpu_custom_call.1} parent=0 // pred_region
    _
  $region13: #{tpu_custom_call.1} parent=0 // pred_fallthru
    _

</llo_original>
